<compile_context>
chip_gen: v7x
topology: tpu7x:2x2x1
jax: 0.10.0
libtpu: 0.0.40
codegen_flags: <defaults>
</compile_context>

<pallas_src>
import jax
import jax.numpy as jnp
from jax.experimental import pallas as pl
from jax.experimental.pallas import tpu as pltpu

_MIB = 1024 * 1024


# --------------------------------------------------------------------------- #
# Hardware / tiling helpers
# --------------------------------------------------------------------------- #
def _vmem_capacity_bytes():
    """Physical VMEM of the attached TPU; conservative 64 MiB fallback (v7x)."""
    try:
        return int(pltpu.get_tpu_info().vmem_capacity_bytes)
    except Exception:  # pragma: no cover - interpret mode / older jax
        return 64 * _MIB


def choose_intermediate_tile(H, I, vmem_cap=None, itemsize=2):
    """Largest lane-legal ti such that the double-buffered bf16 weight slabs
    (merged gate|up (H, 2*ti) + down (ti, H)) stay under ~45% of VMEM."""
    if vmem_cap is None:
        vmem_cap = _vmem_capacity_bytes()
    budget = int(0.45 * vmem_cap)
    for cand in (1024, 512, 256, 128):
        if I % cand == 0 and 2 * 3 * cand * H * itemsize <= budget:
            return cand
    for cand in (128, 256, 512, 1024):  # smallest legal divisor as a fallback
        if I % cand == 0:
            return cand
    return I


def _choose_tm(T_pad, H, ti, vmem_cap, itemsize=2):
    """Token-tile size.  Arithmetic intensity ~ tm flop per weight byte, so go as
    large as the VMEM left over by the weight slabs allows; cap at 384 on 64-MiB
    parts (v7x per-TC ridge ~310 flop/B) and 512 otherwise (v6e ridge ~680);
    prefer >= 2 token tiles so both TensorCores get work."""
    weight_buf = 2 * 3 * ti * H * itemsize                    # double-buffered slabs
    avail = max(vmem_cap - weight_buf, 8 * _MIB)
    per_row = H * (2 * itemsize + 2 * itemsize + 4)           # x(2buf)+out(2buf)+f32 acc
    budget_rows = int(0.5 * avail // per_row)
    max_tm = 384 if vmem_cap <= 64 * _MIB else 512
    candidates = [c for c in (512, 384, 256, 128, 64, 32, 16) if c <= max_tm]
    for c in candidates:
        if T_pad % c == 0 and c <= budget_rows and (T_pad // c >= 2 or c == T_pad):
            return c
    for c in candidates:
        if T_pad % c == 0:
            return c
    return T_pad


# --------------------------------------------------------------------------- #
# One-time (load-time) weight preparation
# --------------------------------------------------------------------------- #
def prepare_fused_llama_mlp_weights(gate_w, up_w, down_w, *, ti=None,
                                    dtype=jnp.bfloat16):
    """Cast to compute dtype, pre-transpose to MXU-native (K, N) layout and merge
    gate/up per intermediate tile so the kernel does one matmul per slab.

    Args:
      gate_w: (I, H) gate_proj.weight (PyTorch Linear layout)
      up_w:   (I, H) up_proj.weight
      down_w: (H, I) down_proj.weight
      ti:     intermediate tile width (multiple of 128); chosen from VMEM if None.
    Returns:
      (wgu, wd, ti) with
        wgu: (H, 2*I), columns laid out [g_tile0 | u_tile0 | g_tile1 | u_tile1 ...]
        wd:  (I, H)
    """
    I, H = gate_w.shape
    assert up_w.shape == (I, H) and down_w.shape == (H, I)
    if ti is None:
        ti = choose_intermediate_tile(H, I)
    assert I % ti == 0 and (ti % 128 == 0 or ti == I), (ti, I)

    n = I // ti
    g_t = gate_w.astype(dtype).T.reshape(H, n, ti)
    u_t = up_w.astype(dtype).T.reshape(H, n, ti)
    wgu = jnp.concatenate([g_t, u_t], axis=-1).reshape(H, 2 * I)
    wd = down_w.astype(dtype).T                              # (I, H)
    return wgu, wd, ti


# --------------------------------------------------------------------------- #
# Kernel
# --------------------------------------------------------------------------- #
def _fused_llama_mlp_kernel(x_ref, wgu_ref, wd_ref, o_ref, acc_ref):
    """One (token-tile i, intermediate-tile j) grid step.

    x_ref:   (tm, H)     bf16 token tile (resident across j)
    wgu_ref: (H, 2*ti)   merged [gate | up] slab, pre-transposed (K on sublanes)
    wd_ref:  (ti, H)     down-proj slab, pre-transposed
    o_ref:   (tm, H)     output tile (written on the last j step)
    acc_ref: (tm, H) f32 accumulator scratch, resident across j
    """
    j = pl.program_id(1)
    x = x_ref[...]

    # Single MXU pass over the merged slab -> [g | u] for this intermediate tile.
    gu = jnp.dot(x, wgu_ref[...], preferred_element_type=jnp.float32)  # (tm, 2*ti)
    half = gu.shape[-1] // 2                                           # lane-aligned
    g = gu[:, :half]
    u = gu[:, half:]

    # SiLU + hadamard in f32 (VPU/EUP), back to bf16 for the MXU down-projection.
    h = (g * jax.nn.sigmoid(g)) * u
    partial = jnp.dot(h.astype(wd_ref.dtype), wd_ref[...],
                      preferred_element_type=jnp.float32)              # (tm, H)

    @pl.when(j == 0)
    def _():
        acc_ref[...] = partial          # first slab: write (no memset + add pass)

    @pl.when(j != 0)
    def _():
        acc_ref[...] += partial

    @pl.when(j == pl.num_programs(1) - 1)
    def _():
        o_ref[...] = acc_ref[...].astype(o_ref.dtype)


# --------------------------------------------------------------------------- #
# Forward
# --------------------------------------------------------------------------- #
def fused_llama_mlp(x, wgu, wd, ti, *, tm=None, vmem_cap=None):
    """Fused LLaMA MLP forward on prepared weights.

    Args:
      x:   (..., H)
      wgu: (H, 2*I) from prepare_fused_llama_mlp_weights
      wd:  (I, H)   from prepare_fused_llama_mlp_weights
      ti:  intermediate tile width used at prep time
      tm:  optional token-tile override (multiple of 8; prefer 16 for bf16)
    Returns:
      (..., H), same dtype as x.
    """
    orig_shape = x.shape
    H = orig_shape[-1]
    I = wgu.shape[1] // 2
    assert wgu.shape == (H, 2 * I) and wd.shape == (I, H)
    assert I % ti == 0 and (ti % 128 == 0 or ti == I)

    compute_dtype = wgu.dtype
    w_itemsize = jnp.dtype(compute_dtype).itemsize

    x2d = x.reshape(-1, H)
    T = x2d.shape[0]

    # Pad tokens to a multiple of 16: bf16 packs 16 rows per sublane group, so
    # 8-row tiles half-fill packed vregs and force masked partial stores.
    T_pad = -(-T // 16) * 16
    if T_pad != T:
        x2d = jnp.pad(x2d, ((0, T_pad - T), (0, 0)))

    if vmem_cap is None:
        vmem_cap = _vmem_capacity_bytes()
    if tm is None:
        tm = _choose_tm(T_pad, H, ti, vmem_cap, itemsize=w_itemsize)
    assert T_pad % tm == 0 and (tm % 8 == 0 or tm == T_pad)

    # Real models should keep activations in compute_dtype upstream; this cast is
    # only paid when x arrives in f32 (as in the test below).
    xc = x2d.astype(compute_dtype)

    grid = (T_pad // tm, I // ti)

    # VMEM budget from the actual tile footprint (double-buffered inputs/outputs
    # + resident f32 accumulator), clamped to the physical capacity.
    weight_buf_bytes = 2 * 3 * ti * H * w_itemsize
    act_bytes = tm * H * (2 * w_itemsize + 2 * x.dtype.itemsize + 4)
    vmem_limit = int(min(0.92 * vmem_cap,
                         max(weight_buf_bytes + act_bytes + 8 * _MIB, 32 * _MIB)))

    # Weights are re-streamed once per token tile.
    bytes_accessed = (xc.size * w_itemsize
                      + grid[0] * (wgu.size + wd.size) * w_itemsize
                      + T_pad * H * x.dtype.itemsize)
    cost = pl.CostEstimate(flops=2 * T_pad * H * I * 3,
                           transcendentals=T_pad * I,
                           bytes_accessed=bytes_accessed)

    out2d = pl.pallas_call(
        _fused_llama_mlp_kernel,
        out_shape=jax.ShapeDtypeStruct((T_pad, H), x.dtype),
        grid_spec=pltpu.PrefetchScalarGridSpec(
            num_scalar_prefetch=0,
            grid=grid,
            in_specs=[
                pl.BlockSpec((tm, H), lambda i, j: (i, 0)),       # x tile (resident over j)
                pl.BlockSpec((H, 2 * ti), lambda i, j: (0, j)),   # merged gate|up slab
                pl.BlockSpec((ti, H), lambda i, j: (j, 0)),       # down-proj slab
            ],
            out_specs=pl.BlockSpec((tm, H), lambda i, j: (i, 0)),
            scratch_shapes=[pltpu.VMEM((tm, H), jnp.float32)],
        ),
        compiler_params=pltpu.CompilerParams(
            # Token axis parallel (v7x: split across the 2 TensorCores),
            # intermediate axis is the accumulation/reduction axis.
            dimension_semantics=("parallel", "arbitrary"),
            vmem_limit_bytes=vmem_limit,
        ),
        cost_estimate=cost,
    )(xc, wgu, wd)

    if T_pad != T:
        out2d = out2d[:T]
    return out2d.reshape(orig_shape)


# --------------------------------------------------------------------------- #
# Pure-JAX reference (matches the kernel's dtype recipe)
# --------------------------------------------------------------------------- #
def _reference_mlp(x, gate_w, up_w, down_w, compute_dtype=jnp.bfloat16):
    xc = x.astype(compute_dtype)
    g = jnp.dot(xc, gate_w.astype(compute_dtype).T,
                preferred_element_type=jnp.float32)
    u = jnp.dot(xc, up_w.astype(compute_dtype).T,
                preferred_element_type=jnp.float32)
    h = (g * jax.nn.sigmoid(g)) * u
    out = jnp.dot(h.astype(compute_dtype), down_w.astype(compute_dtype).T,
                  preferred_element_type=jnp.float32)
    return out.astype(x.dtype)


if __name__ == "__main__":
    key = jax.random.PRNGKey(0)
    # Small, lane-friendly shapes so the tiled path is actually exercised.
    batch, seq, hidden, intermediate = 2, 16, 256, 1024

    kx, kg, ku, kd = jax.random.split(key, 4)
    x = jax.random.normal(kx, (batch, seq, hidden), dtype=jnp.float32)
    gate_w = jax.random.normal(kg, (intermediate, hidden), dtype=jnp.float32) * 0.05
    up_w = jax.random.normal(ku, (intermediate, hidden), dtype=jnp.float32) * 0.05
    down_w = jax.random.normal(kd, (hidden, intermediate), dtype=jnp.float32) * 0.05

    # Small tile overrides so the toy problem exercises BOTH grid axes:
    # tokens 32/16 = 2 parallel tiles, intermediate 1024/256 = 4 reduction steps.
    wgu, wd, ti = prepare_fused_llama_mlp_weights(gate_w, up_w, down_w, ti=256)
    out = fused_llama_mlp(x, wgu, wd, ti, tm=16)
    out = jax.block_until_ready(out)

    ref = _reference_mlp(x, gate_w, up_w, down_w)
    assert out.shape == x.shape
    max_err = float(jnp.max(jnp.abs(out - ref)))
    assert jnp.allclose(out, ref, atol=2e-2, rtol=2e-2), (
        f"mismatch vs reference, max abs err {max_err}")

    print("KERNEL_OK")
</pallas_src>

<mosaic_0001>
module attributes {stable_mosaic.version = 11 : i64} {
  func.func @_fused_llama_mlp_kernel(%arg0: i32, %arg1: i32, %arg2: memref<16x256xbf16, #tpu.memory_space<vmem>>, %arg3: memref<256x512xbf16, #tpu.memory_space<vmem>>, %arg4: memref<256x256xbf16, #tpu.memory_space<vmem>>, %arg5: memref<16x256xf32, #tpu.memory_space<vmem>>, %arg6: memref<16x256xf32, #tpu.memory_space<vmem>>) attributes {dimension_semantics = [#tpu.dimension_semantics<parallel>, #tpu.dimension_semantics<arbitrary>], iteration_bounds = array<i64: 2, 4>, scalar_prefetch = 0 : i64, scratch_operands = 1 : i64, tpu.core_type = #tpu.core_type<tc>, window_params = [{transform_indices = @transform_0, window_bounds = array<i64: 16, 256>}, {transform_indices = @transform_1, window_bounds = array<i64: 256, 512>}, {transform_indices = @transform_2, window_bounds = array<i64: 256, 256>}, {transform_indices = @transform_3, window_bounds = array<i64: 16, 256>}]} {
    %c0 = arith.constant 0 : index
    %c0_0 = arith.constant 0 : index
    %0 = vector.load %arg2[%c0, %c0_0] : memref<16x256xbf16, #tpu.memory_space<vmem>>, vector<16x256xbf16>
    %c0_1 = arith.constant 0 : index
    %c0_2 = arith.constant 0 : index
    %1 = vector.load %arg3[%c0_1, %c0_2] : memref<256x512xbf16, #tpu.memory_space<vmem>>, vector<256x512xbf16>
    %cst = arith.constant dense<0.000000e+00> : vector<16x512xf32>
    %2 = tpu.matmul %0, %1, %cst {dimension_numbers = #tpu.dot_dimension_numbers<[1], [0], [0], [1], [0, 0, 1, 1], [], []>} : vector<16x256xbf16>, vector<256x512xbf16>, vector<16x512xf32> -> vector<16x512xf32>
    %3 = vector.extract_strided_slice %2 {offsets = [0, 0], sizes = [16, 256], strides = [1, 1]} : vector<16x512xf32> to vector<16x256xf32>
    %4 = vector.extract_strided_slice %2 {offsets = [0, 256], sizes = [16, 256], strides = [1, 1]} : vector<16x512xf32> to vector<16x256xf32>
    %5 = arith.negf %3 : vector<16x256xf32>
    %6 = math.exp %5 : vector<16x256xf32>
    %cst_3 = arith.constant 1.000000e+00 : f32
    %7 = vector.broadcast %cst_3 : f32 to vector<16x256xf32>
    %8 = arith.addf %7, %6 : vector<16x256xf32>
    %9 = arith.divf %7, %8 : vector<16x256xf32>
    %10 = arith.mulf %3, %9 : vector<16x256xf32>
    %11 = arith.mulf %10, %4 : vector<16x256xf32>
    %12 = arith.truncf %11 : vector<16x256xf32> to vector<16x256xbf16>
    %c0_4 = arith.constant 0 : index
    %c0_5 = arith.constant 0 : index
    %13 = vector.load %arg4[%c0_4, %c0_5] : memref<256x256xbf16, #tpu.memory_space<vmem>>, vector<256x256xbf16>
    %cst_6 = arith.constant dense<0.000000e+00> : vector<16x256xf32>
    %14 = tpu.matmul %12, %13, %cst_6 {dimension_numbers = #tpu.dot_dimension_numbers<[1], [0], [0], [1], [0, 0, 1, 1], [], []>} : vector<16x256xbf16>, vector<256x256xbf16>, vector<16x256xf32> -> vector<16x256xf32>
    %c0_i32 = arith.constant 0 : i32
    %15 = arith.cmpi eq, %arg1, %c0_i32 : i32
    %16 = arith.extui %15 : i1 to i32
    %c0_i32_7 = arith.constant 0 : i32
    %17 = arith.cmpi ne, %16, %c0_i32_7 : i32
    scf.if %17 {
      %c0_11 = arith.constant 0 : index
      %c0_12 = arith.constant 0 : index
      %24 = vector.load %arg6[%c0_11, %c0_12] : memref<16x256xf32, #tpu.memory_space<vmem>>, vector<16x256xf32>
      tpu.vector_store %arg6[%c0_11, %c0_12], %14 {strides = array<i32>} : memref<16x256xf32, #tpu.memory_space<vmem>>, vector<16x256xf32>,
    } else {
    }
    %c0_i32_8 = arith.constant 0 : i32
    %18 = arith.cmpi ne, %arg1, %c0_i32_8 : i32
    %19 = arith.extui %18 : i1 to i32
    %c0_i32_9 = arith.constant 0 : i32
    %20 = arith.cmpi ne, %19, %c0_i32_9 : i32
    scf.if %20 {
      %c0_11 = arith.constant 0 : index
      %c0_12 = arith.constant 0 : index
      %24 = vector.load %arg6[%c0_11, %c0_12] : memref<16x256xf32, #tpu.memory_space<vmem>>, vector<16x256xf32>
      %25 = arith.addf %24, %14 : vector<16x256xf32>
      %c0_13 = arith.constant 0 : index
      %c0_14 = arith.constant 0 : index
      %26 = vector.load %arg6[%c0_13, %c0_14] : memref<16x256xf32, #tpu.memory_space<vmem>>, vector<16x256xf32>
      tpu.vector_store %arg6[%c0_13, %c0_14], %25 {strides = array<i32>} : memref<16x256xf32, #tpu.memory_space<vmem>>, vector<16x256xf32>,
    } else {
    }
    %c3_i32 = arith.constant 3 : i32
    %21 = arith.cmpi eq, %arg1, %c3_i32 : i32
    %22 = arith.extui %21 : i1 to i32
    %c0_i32_10 = arith.constant 0 : i32
    %23 = arith.cmpi ne, %22, %c0_i32_10 : i32
    scf.if %23 {
      %c0_11 = arith.constant 0 : index
      %c0_12 = arith.constant 0 : index
      %24 = vector.load %arg6[%c0_11, %c0_12] : memref<16x256xf32, #tpu.memory_space<vmem>>, vector<16x256xf32>
      %c0_13 = arith.constant 0 : index
      %c0_14 = arith.constant 0 : index
      %25 = vector.load %arg5[%c0_13, %c0_14] : memref<16x256xf32, #tpu.memory_space<vmem>>, vector<16x256xf32>
      tpu.vector_store %arg5[%c0_13, %c0_14], %24 {strides = array<i32>} : memref<16x256xf32, #tpu.memory_space<vmem>>, vector<16x256xf32>,
    } else {
    }
    return
  }
  func.func @transform_0(%arg0: i32, %arg1: i32) -> (i32, i32) {
    %c0_i32 = arith.constant 0 : i32
    %c0_i32_0 = arith.constant 0 : i32
    return %arg0, %c0_i32 : i32, i32
  }
  func.func @transform_1(%arg0: i32, %arg1: i32) -> (i32, i32) {
    %c0_i32 = arith.constant 0 : i32
    %c0_i32_0 = arith.constant 0 : i32
    return %c0_i32, %arg1 : i32, i32
  }
  func.func @transform_2(%arg0: i32, %arg1: i32) -> (i32, i32) {
    %c0_i32 = arith.constant 0 : i32
    %c0_i32_0 = arith.constant 0 : i32
    return %arg1, %c0_i32 : i32, i32
  }
  func.func @transform_3(%arg0: i32, %arg1: i32) -> (i32, i32) {
    %c0_i32 = arith.constant 0 : i32
    %c0_i32_0 = arith.constant 0 : i32
    return %arg0, %c0_i32 : i32, i32
  }
}

</mosaic_0001>

<llo_original>
// kernel: tpu_custom_call.1
$region0: #{tpu_custom_call.1}
  #allocation0 [shape = 'u32[]', space=smem, size = 0x4, offset = 0x4, fixed_abs, tag = 'smem constant byte address 0x4 - core index']
  #allocation1 [shape = 'u32[144,128]{1,0:T(1,128)}', space=vmem, size = 0x12000, scoped, tag = 'internal scratch']
  #allocation2 [shape = 'f32[16,256]{1,0:T(8,128)}', space=vmem, size = 0x4000, scoped, tag = 'scratch operand']
  %s0 = inlined_call_operand.hbm [shape: bf16[32,256], index: 0, kind: input, shape index: {}]
  %s1 = inlined_call_operand.hbm [shape: bf16[256,2048], index: 1, kind: input, shape index: {}]
  %s2 = inlined_call_operand.hbm [shape: bf16[1024,256], index: 2, kind: input, shape index: {}]
  %s3 = inlined_call_operand.hbm [shape: f32[32,256], index: 3, kind: output, shape index: {}]
  %s4 = sld [smem:[#allocation0]]
  $region69: #{tpu_custom_call.1} parent=0
    _
  %s6 = ssub.s32 1, %s4
  %s7 = scalar_select 0, %s6, %s4
  $region1: #{tpu_custom_call.1} parent=0
    #allocation3 [shape = 'u8[16384]{0}', space=vmem, size = 0x4000, scoped, tag = 'input window, operand 0']
    #allocation4 [shape = 's32[2]{0}', space=sflag, size = 0x8, scoped, tag = 'scoped memory for tpu_custom_call.1']
    #allocation5 [shape = 's32[2]{0}', space=sflag, size = 0x8, scoped, tag = 'scoped memory for tpu_custom_call.1']
    #allocation6 [shape = 'u8[524288]{0}', space=vmem, size = 0x80000, scoped, tag = 'input window, operand 1']
    #allocation7 [shape = 's32[2]{0}', space=sflag, size = 0x8, scoped, tag = 'scoped memory for tpu_custom_call.1']
    #allocation8 [shape = 'u8[262144]{0}', space=vmem, size = 0x40000, scoped, tag = 'input window, operand 2']
    #allocation9 [shape = 'u8[32768]{0}', space=vmem, size = 0x8000, scoped, tag = 'output window, operand 0']
    %8 = vsyncpa [#allocation4], 0
    %s9 = scalar_lea.sflag [#allocation4], 1
    %10 = vsyncpa %s9, 0
    %11 = vsyncpa [#allocation7], 0
    %s12 = scalar_lea.sflag [#allocation7], 1
    %13 = vsyncpa %s12, 0
    %14 = vsyncpa [#allocation5], 0
    %s15 = scalar_lea.sflag [#allocation5], 1
    %16 = vsyncpa %s15, 0
    loop: start=0, step=1, limit=10
    $region2: #{tpu_custom_call.1} parent=1 // loop_pre_header
      _
    $region3: #{tpu_custom_call.1} parent=1 // loop_header
      %s18 = sphi 0, %s22
      %p19 = scmp.ge.s32.totalorder %s18, 10
      %s25 = sphi 0, %s37
      %s26 = sphi 0, %s33
      %s27 = sphi 0, %s25
      %s28 = sphi 0, %s26
      %s29 = sphi 0, %s27
      %s30 = sphi 0, %s28
      %s40 = sphi 0, %s42
      %s43 = sphi 0, %s40
      %s44 = sphi 0, %s43
      %s60 = sphi 0, %s44
      %s66 = sphi 0, %s68
      %s69 = sphi 0, %s66
      %s70 = sphi 0, %s69
      %s86 = sphi 0, %s70
      %s92 = sphi 0, %s94
      %s95 = sphi 0, %s92
      %s96 = sphi 0, %s95
      %s112 = sphi 0, %s96
      %s118 = sphi 0, %s120
      %s121 = sphi 0, %s118
      %s122 = sphi 0, %s121
      %s138 = sphi 0, %s122
    $region4: #{tpu_custom_call.1} parent=1 // loop_header_branch
      %21 = sbr.rel (%p19) target = $region8
    $region5: #{tpu_custom_call.1} parent=1 // loop_body
      %s23 = ssub.s32 %s18, 1
      %s24 = ssub.s32 %s18, 2
      %s31 = sadd.s32 1, %s26
      %p32 = scmp.ge.s32.totalorder %s31, 4
      %s33 = scalar_select %p32, 0, %s31
      %s34 = sadd.s32 1, %s25
      %s35 = scalar_select %p32, %s34, %s25
      %p36 = scmp.ge.s32.totalorder %s35, 2
      %s37 = scalar_select %p36, 0, %s35
      %s38 = ssub.s32 %s25, %s37
      %p39 = scmp.eq.s32.totalorder %s38, 0
      %s41 = sadd.s32 %s40, 1
      %s42 = scalar_select %p39, %s40, %s41
      %p45 = pneg %p39
      %p46 = scmp.eq.s32.totalorder %s18, 7
      %p47 = por %p45, %p46
      %p48 = scmp.ne.s32.totalorder %s40, %s43
      %p49 = scmp.eq.s32.totalorder %s18, 0
      %p50 = por %p48, %p49
      %p51 = scmp.ne.s32.totalorder %s40, %s43
      %p52 = scmp.eq.s32.totalorder %s23, 7
      %p53 = por %p51, %p52
      %p54 = scmp.ne.s32.totalorder %s43, %s44
      %p55 = scmp.eq.s32.totalorder %s23, 0
      %p56 = por %p54, %p55
      %p57 = scmp.ne.s32.totalorder %s43, %s44
      %p58 = scmp.eq.s32.totalorder %s24, 7
      %p59 = por %p57, %p58
      %p61 = scmp.ne.s32.totalorder %s44, %s60
      %p62 = scmp.eq.s32.totalorder %s24, 0
      %p63 = por %p61, %p62
      %s64 = ssub.s32 %s26, %s33
      %p65 = scmp.eq.s32.totalorder %s64, 0
      %s67 = sadd.s32 %s66, 1
      %s68 = scalar_select %p65, %s66, %s67
      %p71 = pneg %p65
      %p72 = scmp.eq.s32.totalorder %s18, 7
      %p73 = por %p71, %p72
      %p74 = scmp.ne.s32.totalorder %s66, %s69
      %p75 = scmp.eq.s32.totalorder %s18, 0
      %p76 = por %p74, %p75
      %p77 = scmp.ne.s32.totalorder %s66, %s69
      %p78 = scmp.eq.s32.totalorder %s23, 7
      %p79 = por %p77, %p78
      %p80 = scmp.ne.s32.totalorder %s69, %s70
      %p81 = scmp.eq.s32.totalorder %s23, 0
      %p82 = por %p80, %p81
      %p83 = scmp.ne.s32.totalorder %s69, %s70
      %p84 = scmp.eq.s32.totalorder %s24, 7
      %p85 = por %p83, %p84
      %p87 = scmp.ne.s32.totalorder %s70, %s86
      %p88 = scmp.eq.s32.totalorder %s24, 0
      %p89 = por %p87, %p88
      %s90 = ssub.s32 %s26, %s33
      %p91 = scmp.eq.s32.totalorder %s90, 0
      %s93 = sadd.s32 %s92, 1
      %s94 = scalar_select %p91, %s92, %s93
      %p97 = pneg %p91
      %p98 = scmp.eq.s32.totalorder %s18, 7
      %p99 = por %p97, %p98
      %p100 = scmp.ne.s32.totalorder %s92, %s95
      %p101 = scmp.eq.s32.totalorder %s18, 0
      %p102 = por %p100, %p101
      %p103 = scmp.ne.s32.totalorder %s92, %s95
      %p104 = scmp.eq.s32.totalorder %s23, 7
      %p105 = por %p103, %p104
      %p106 = scmp.ne.s32.totalorder %s95, %s96
      %p107 = scmp.eq.s32.totalorder %s23, 0
      %p108 = por %p106, %p107
      %p109 = scmp.ne.s32.totalorder %s95, %s96
      %p110 = scmp.eq.s32.totalorder %s24, 7
      %p111 = por %p109, %p110
      %p113 = scmp.ne.s32.totalorder %s96, %s112
      %p114 = scmp.eq.s32.totalorder %s24, 0
      %p115 = por %p113, %p114
      %s116 = ssub.s32 %s25, %s37
      %p117 = scmp.eq.s32.totalorder %s116, 0
      %s119 = sadd.s32 %s118, 1
      %s120 = scalar_select %p117, %s118, %s119
      %p123 = pneg %p117
      %p124 = scmp.eq.s32.totalorder %s18, 7
      %p125 = por %p123, %p124
      %p126 = scmp.ne.s32.totalorder %s118, %s121
      %p127 = scmp.eq.s32.totalorder %s18, 0
      %p128 = por %p126, %p127
      %p129 = scmp.ne.s32.totalorder %s118, %s121
      %p130 = scmp.eq.s32.totalorder %s23, 7
      %p131 = por %p129, %p130
      %p132 = scmp.ne.s32.totalorder %s121, %s122
      %p133 = scmp.eq.s32.totalorder %s23, 0
      %p134 = por %p132, %p133
      %p135 = scmp.ne.s32.totalorder %s121, %s122
      %p136 = scmp.eq.s32.totalorder %s24, 7
      %p137 = por %p135, %p136
      %p139 = scmp.ne.s32.totalorder %s122, %s138
      %p140 = scmp.eq.s32.totalorder %s24, 0
      %p141 = por %p139, %p140
      %p142 = scmp.le.s32.totalorder 1, %s18
      %p143 = scmp.lt.s32.totalorder %s18, 9
      %p144 = pnand %p142, %p143
      %p145 = pneg %p144
      // Predicated region
      $region9: #{tpu_custom_call.1} parent=5 // pred_check
        _
      $region10: #{tpu_custom_call.1} parent=5 // pred_check_branch
        %147 = sbr.rel (%p144) target = $region12
      $region11: #{tpu_custom_call.1} parent=5 // pred_region
        %s148 = ssub.s32 %s18, 1
      $region12: #{tpu_custom_call.1} parent=5 // pred_fallthru
        _
      %p149 = scmp.lt.s32.totalorder %s18, 8
      // Predicated region
      $region13: #{tpu_custom_call.1} parent=5 // pred_check
        %p150 = pneg %p149
      $region14: #{tpu_custom_call.1} parent=5 // pred_check_branch
        %152 = sbr.rel (%p150) target = $region16
      $region15: #{tpu_custom_call.1} parent=5 // pred_region
        // Predicated region
        $region17: #{tpu_custom_call.1} parent=15 // pred_check
          %p153 = pneg %p50
        $region18: #{tpu_custom_call.1} parent=15 // pred_check_branch
          %155 = sbr.rel (%p153) target = $region20
        $region19: #{tpu_custom_call.1} parent=15 // pred_region
          %s156 = sand.u32 %s40, 1
          %s157 = scalar_lea.sflag [#allocation4], %s156
          %s158 = sand.u32 %s40, 1
          %s159 = smul.addr %s158, 16
          %s160 = scalar_lea.vmem [#allocation3], %s159
          %s161 = smul.u32 2, %s25
          %s163 = ssub.s32 256, 256
          %164 = vsyncadd %s157, %s163
          %s165 = smul.addr %s161, 2
          %s166 = smul.addr %s165, 64
          %s167 = scalar_lea.hbm %s0, %s166
          %s168 = sshll.u32 %s160, 4
          %s169 = int_to_ptr.vmem [resolvable:$true] %s168
          %174 = dma.hbm_to_vmem [thread:$0]  %s167, 256, %s169, %s157, 128, 128, 8
        $region20: #{tpu_custom_call.1} parent=15 // pred_fallthru
          _
        // Predicated region
        $region21: #{tpu_custom_call.1} parent=15 // pred_check
          %p175 = pneg %p76
        $region22: #{tpu_custom_call.1} parent=15 // pred_check_branch
          %177 = sbr.rel (%p175) target = $region24
        $region23: #{tpu_custom_call.1} parent=15 // pred_region
          %s178 = sand.u32 %s18, 1
          %s179 = scalar_lea.sflag [#allocation7], %s178
          %s180 = sand.u32 %s66, 1
          %s181 = smul.addr %s180, 512
          %s182 = scalar_lea.vmem [#allocation6], %s181
          %s183 = smul.u32 4, %s26
          %s185 = ssub.s32 8192, 8192
          %186 = vsyncadd %s179, %s185
          %s187 = smul.addr %s183, 64
          %s188 = scalar_lea.hbm %s1, %s187
          %s189 = sshll.u32 %s182, 4
          %s190 = int_to_ptr.vmem [resolvable:$true] %s189
          %195 = dma.hbm_to_vmem [thread:$0]  %s188, 8192, %s190, %s179, 1024, 256, 16
        $region24: #{tpu_custom_call.1} parent=15 // pred_fallthru
          _
        // Predicated region
        $region25: #{tpu_custom_call.1} parent=15 // pred_check
          %p196 = pneg %p102
        $region26: #{tpu_custom_call.1} parent=15 // pred_check_branch
          %198 = sbr.rel (%p196) target = $region28
        $region27: #{tpu_custom_call.1} parent=15 // pred_region
          %s199 = sand.u32 %s18, 1
          %s200 = scalar_lea.sflag [#allocation7], %s199
          %s201 = sand.u32 %s92, 1
          %s202 = smul.addr %s201, 256
          %s203 = scalar_lea.vmem [#allocation8], %s202
          %s204 = smul.u32 32, %s26
          %s206 = ssub.s32 4096, 4096
          %207 = vsyncadd %s200, %s206
          %s208 = smul.addr %s204, 2
          %s209 = smul.addr %s208, 64
          %s210 = scalar_lea.hbm %s2, %s209
          %s211 = sshll.u32 %s203, 4
          %s212 = int_to_ptr.vmem [resolvable:$true] %s211
          %217 = dma.hbm_to_vmem [thread:$0]  %s210, 4096, %s212, %s200, 128, 128, 8
        $region28: #{tpu_custom_call.1} parent=15 // pred_fallthru
          _
      $region16: #{tpu_custom_call.1} parent=5 // pred_fallthru
        _
      %p218 = scmp.le.s32.totalorder 1, %s18
      %p219 = scmp.lt.s32.totalorder %s18, 9
      %p220 = pnand %p218, %p219
      %p221 = pneg %p220
      // Predicated region
      $region29: #{tpu_custom_call.1} parent=5 // pred_check
        _
      $region30: #{tpu_custom_call.1} parent=5 // pred_check_branch
        %223 = sbr.rel (%p220) target = $region32
      $region31: #{tpu_custom_call.1} parent=5 // pred_region
        %s224 = ssub.s32 %s18, 1
        %s225 = sand.u32 %s43, 1
        %s226 = scalar_lea.sflag [#allocation4], %s225
        %s227 = sand.u32 %s43, 1
        %s228 = smul.addr %s227, 16
        %s229 = scalar_lea.vmem [#allocation3], %s228
        // Predicated region
        $region33: #{tpu_custom_call.1} parent=31 // pred_check
          %p230 = pneg %p56
        $region34: #{tpu_custom_call.1} parent=31 // pred_check_branch
          %232 = sbr.rel (%p230) target = $region36
        $region35: #{tpu_custom_call.1} parent=31 // pred_region
          %233 = dma.done %s226, 256
        $region36: #{tpu_custom_call.1} parent=31 // pred_fallthru
          _
        %s234 = sand.u32 %s23, 1
        %s235 = scalar_lea.sflag [#allocation7], %s234
        %s236 = sand.u32 %s69, 1
        %s237 = smul.addr %s236, 512
        %s238 = scalar_lea.vmem [#allocation6], %s237
        // Predicated region
        $region37: #{tpu_custom_call.1} parent=31 // pred_check
          %p239 = pneg %p82
        $region38: #{tpu_custom_call.1} parent=31 // pred_check_branch
          %241 = sbr.rel (%p239) target = $region40
        $region39: #{tpu_custom_call.1} parent=31 // pred_region
          %242 = dma.done %s235, 8192
        $region40: #{tpu_custom_call.1} parent=31 // pred_fallthru
          _
        %s243 = sand.u32 %s23, 1
        %s244 = scalar_lea.sflag [#allocation7], %s243
        %s245 = sand.u32 %s95, 1
        %s246 = smul.addr %s245, 256
        %s247 = scalar_lea.vmem [#allocation8], %s246
        // Predicated region
        $region41: #{tpu_custom_call.1} parent=31 // pred_check
          %p248 = pneg %p108
        $region42: #{tpu_custom_call.1} parent=31 // pred_check_branch
          %250 = sbr.rel (%p248) target = $region44
        $region43: #{tpu_custom_call.1} parent=31 // pred_region
          %251 = dma.done %s244, 4096
        $region44: #{tpu_custom_call.1} parent=31 // pred_fallthru
          _
        %s252 = sand.u32 %s43, 1
        %s253 = scalar_lea.sflag [#allocation4], %s252
        %s254 = sand.u32 %s43, 1
        %s255 = smul.addr %s254, 16
        %s256 = scalar_lea.vmem [#allocation3], %s255
        %p257 = pneg %p56
        %p258 = pneg %p53
        %s259 = sand.u32 %s23, 1
        %s260 = scalar_lea.sflag [#allocation7], %s259
        %s261 = sand.u32 %s69, 1
        %s262 = smul.addr %s261, 512
        %s263 = scalar_lea.vmem [#allocation6], %s262
        %p264 = pneg %p82
        %p265 = pneg %p79
        %s266 = sand.u32 %s23, 1
        %s267 = scalar_lea.sflag [#allocation7], %s266
        %s268 = sand.u32 %s95, 1
        %s269 = smul.addr %s268, 256
        %s270 = scalar_lea.vmem [#allocation8], %s269
        %p271 = pneg %p108
        %p272 = pneg %p105
        %p273 = pneg %p134
        %p274 = pneg %p131
        %s275 = sand.u32 %s121, 1
        %s276 = scalar_lea.sflag [#allocation5], %s275
        %s277 = sand.u32 %s121, 1
        %s278 = smul.addr %s277, 32
        %s279 = scalar_lea.vmem [#allocation9], %s278
        %s280 = smul.u32 2, %s27
        %s281 = smul.u32 4, %s28
        %s282 = smul.u32 32, %s28
        %s283 = smul.u32 2, %s27
        %v284 = vld [vmem:[%s229] sm:$0xff]
        %v285 = vld [vmem:[%s229 + $0x8] sm:$0xff]
        %v286 = vld [vmem:[%s238] sm:$0xff]
        %v287 = vld [vmem:[%s238 + $0x8] sm:$0xff]
        %v288 = vld [vmem:[%s238 + $0x10] sm:$0xff]
        %v289 = vld [vmem:[%s238 + $0x18] sm:$0xff]
        %v290 = vld [vmem:[%s238 + $0x20] sm:$0xff]
        %v291 = vld [vmem:[%s238 + $0x28] sm:$0xff]
        %v292 = vld [vmem:[%s238 + $0x30] sm:$0xff]
        %v293 = vld [vmem:[%s238 + $0x38] sm:$0xff]
        %v294 = vld [vmem:[%s238 + $0x40] sm:$0xff]
        %v295 = vld [vmem:[%s238 + $0x48] sm:$0xff]
        %v296 = vld [vmem:[%s238 + $0x50] sm:$0xff]
        %v297 = vld [vmem:[%s238 + $0x58] sm:$0xff]
        %v298 = vld [vmem:[%s238 + $0x60] sm:$0xff]
        %v299 = vld [vmem:[%s238 + $0x68] sm:$0xff]
        %v300 = vld [vmem:[%s238 + $0x70] sm:$0xff]
        %v301 = vld [vmem:[%s238 + $0x78] sm:$0xff]
        %v302 = vld [vmem:[%s238 + $0x80] sm:$0xff]
        %v303 = vld [vmem:[%s238 + $0x88] sm:$0xff]
        %v304 = vld [vmem:[%s238 + $0x90] sm:$0xff]
        %v305 = vld [vmem:[%s238 + $0x98] sm:$0xff]
        %v306 = vld [vmem:[%s238 + $0xa0] sm:$0xff]
        %v307 = vld [vmem:[%s238 + $0xa8] sm:$0xff]
        %v308 = vld [vmem:[%s238 + $0xb0] sm:$0xff]
        %v309 = vld [vmem:[%s238 + $0xb8] sm:$0xff]
        %v310 = vld [vmem:[%s238 + $0xc0] sm:$0xff]
        %v311 = vld [vmem:[%s238 + $0xc8] sm:$0xff]
        %v312 = vld [vmem:[%s238 + $0xd0] sm:$0xff]
        %v313 = vld [vmem:[%s238 + $0xd8] sm:$0xff]
        %v314 = vld [vmem:[%s238 + $0xe0] sm:$0xff]
        %v315 = vld [vmem:[%s238 + $0xe8] sm:$0xff]
        %v316 = vld [vmem:[%s238 + $0xf0] sm:$0xff]
        %v317 = vld [vmem:[%s238 + $0xf8] sm:$0xff]
        %v318 = vld [vmem:[%s238 + $0x100] sm:$0xff]
        %v319 = vld [vmem:[%s238 + $0x108] sm:$0xff]
        %v320 = vld [vmem:[%s238 + $0x110] sm:$0xff]
        %v321 = vld [vmem:[%s238 + $0x118] sm:$0xff]
        %v322 = vld [vmem:[%s238 + $0x120] sm:$0xff]
        %v323 = vld [vmem:[%s238 + $0x128] sm:$0xff]
        %v324 = vld [vmem:[%s238 + $0x130] sm:$0xff]
        %v325 = vld [vmem:[%s238 + $0x138] sm:$0xff]
        %v326 = vld [vmem:[%s238 + $0x140] sm:$0xff]
        %v327 = vld [vmem:[%s238 + $0x148] sm:$0xff]
        %v328 = vld [vmem:[%s238 + $0x150] sm:$0xff]
        %v329 = vld [vmem:[%s238 + $0x158] sm:$0xff]
        %v330 = vld [vmem:[%s238 + $0x160] sm:$0xff]
        %v331 = vld [vmem:[%s238 + $0x168] sm:$0xff]
        %v332 = vld [vmem:[%s238 + $0x170] sm:$0xff]
        %v333 = vld [vmem:[%s238 + $0x178] sm:$0xff]
        %v334 = vld [vmem:[%s238 + $0x180] sm:$0xff]
        %v335 = vld [vmem:[%s238 + $0x188] sm:$0xff]
        %v336 = vld [vmem:[%s238 + $0x190] sm:$0xff]
        %v337 = vld [vmem:[%s238 + $0x198] sm:$0xff]
        %v338 = vld [vmem:[%s238 + $0x1a0] sm:$0xff]
        %v339 = vld [vmem:[%s238 + $0x1a8] sm:$0xff]
        %v340 = vld [vmem:[%s238 + $0x1b0] sm:$0xff]
        %v341 = vld [vmem:[%s238 + $0x1b8] sm:$0xff]
        %v342 = vld [vmem:[%s238 + $0x1c0] sm:$0xff]
        %v343 = vld [vmem:[%s238 + $0x1c8] sm:$0xff]
        %v344 = vld [vmem:[%s238 + $0x1d0] sm:$0xff]
        %v345 = vld [vmem:[%s238 + $0x1d8] sm:$0xff]
        %v346 = vld [vmem:[%s238 + $0x1e0] sm:$0xff]
        %v347 = vld [vmem:[%s238 + $0x1e8] sm:$0xff]
        %v348 = vld [vmem:[%s238 + $0x1f0] sm:$0xff]
        %v349 = vld [vmem:[%s238 + $0x1f8] sm:$0xff]
        %v352 = vunpack.c.l.b16 %v284
        %v353 = vunpack.c.h.b16 %v284
        %v354 = vunpack.c.l.b16 %v285
        %v355 = vunpack.c.h.b16 %v285
        %v356 = vpack.c.b16 %v354, %v352
        %v357 = vpack.c.b16 %v355, %v353
        %v424 = vunpack.c.l.b16 %v286
        %v425 = vunpack.c.h.b16 %v286
        %v426 = vunpack.c.l.b16 %v287
        %v427 = vunpack.c.h.b16 %v287
        %v428 = vunpack.c.l.b16 %v288
        %v429 = vunpack.c.h.b16 %v288
        %v430 = vunpack.c.l.b16 %v289
        %v431 = vunpack.c.h.b16 %v289
        %v432 = vunpack.c.l.b16 %v290
        %v433 = vunpack.c.h.b16 %v290
        %v434 = vunpack.c.l.b16 %v291
        %v435 = vunpack.c.h.b16 %v291
        %v436 = vunpack.c.l.b16 %v292
        %v437 = vunpack.c.h.b16 %v292
        %v438 = vunpack.c.l.b16 %v293
        %v439 = vunpack.c.h.b16 %v293
        %v440 = vunpack.c.l.b16 %v294
        %v441 = vunpack.c.h.b16 %v294
        %v442 = vunpack.c.l.b16 %v295
        %v443 = vunpack.c.h.b16 %v295
        %v444 = vunpack.c.l.b16 %v296
        %v445 = vunpack.c.h.b16 %v296
        %v446 = vunpack.c.l.b16 %v297
        %v447 = vunpack.c.h.b16 %v297
        %v448 = vunpack.c.l.b16 %v298
        %v449 = vunpack.c.h.b16 %v298
        %v450 = vunpack.c.l.b16 %v299
        %v451 = vunpack.c.h.b16 %v299
        %v452 = vunpack.c.l.b16 %v300
        %v453 = vunpack.c.h.b16 %v300
        %v454 = vunpack.c.l.b16 %v301
        %v455 = vunpack.c.h.b16 %v301
        %v456 = vunpack.c.l.b16 %v302
        %v457 = vunpack.c.h.b16 %v302
        %v458 = vunpack.c.l.b16 %v303
        %v459 = vunpack.c.h.b16 %v303
        %v460 = vunpack.c.l.b16 %v304
        %v461 = vunpack.c.h.b16 %v304
        %v462 = vunpack.c.l.b16 %v305
        %v463 = vunpack.c.h.b16 %v305
        %v464 = vunpack.c.l.b16 %v306
        %v465 = vunpack.c.h.b16 %v306
        %v466 = vunpack.c.l.b16 %v307
        %v467 = vunpack.c.h.b16 %v307
        %v468 = vunpack.c.l.b16 %v308
        %v469 = vunpack.c.h.b16 %v308
        %v470 = vunpack.c.l.b16 %v309
        %v471 = vunpack.c.h.b16 %v309
        %v472 = vunpack.c.l.b16 %v310
        %v473 = vunpack.c.h.b16 %v310
        %v474 = vunpack.c.l.b16 %v311
        %v475 = vunpack.c.h.b16 %v311
        %v476 = vunpack.c.l.b16 %v312
        %v477 = vunpack.c.h.b16 %v312
        %v478 = vunpack.c.l.b16 %v313
        %v479 = vunpack.c.h.b16 %v313
        %v480 = vunpack.c.l.b16 %v314
        %v481 = vunpack.c.h.b16 %v314
        %v482 = vunpack.c.l.b16 %v315
        %v483 = vunpack.c.h.b16 %v315
        %v484 = vunpack.c.l.b16 %v316
        %v485 = vunpack.c.h.b16 %v316
        %v486 = vunpack.c.l.b16 %v317
        %v487 = vunpack.c.h.b16 %v317
        %v488 = vunpack.c.l.b16 %v318
        %v489 = vunpack.c.h.b16 %v318
        %v490 = vunpack.c.l.b16 %v319
        %v491 = vunpack.c.h.b16 %v319
        %v492 = vunpack.c.l.b16 %v320
        %v493 = vunpack.c.h.b16 %v320
        %v494 = vunpack.c.l.b16 %v321
        %v495 = vunpack.c.h.b16 %v321
        %v496 = vunpack.c.l.b16 %v322
        %v497 = vunpack.c.h.b16 %v322
        %v498 = vunpack.c.l.b16 %v323
        %v499 = vunpack.c.h.b16 %v323
        %v500 = vunpack.c.l.b16 %v324
        %v501 = vunpack.c.h.b16 %v324
        %v502 = vunpack.c.l.b16 %v325
        %v503 = vunpack.c.h.b16 %v325
        %v504 = vunpack.c.l.b16 %v326
        %v505 = vunpack.c.h.b16 %v326
        %v506 = vunpack.c.l.b16 %v327
        %v507 = vunpack.c.h.b16 %v327
        %v508 = vunpack.c.l.b16 %v328
        %v509 = vunpack.c.h.b16 %v328
        %v510 = vunpack.c.l.b16 %v329
        %v511 = vunpack.c.h.b16 %v329
        %v512 = vunpack.c.l.b16 %v330
        %v513 = vunpack.c.h.b16 %v330
        %v514 = vunpack.c.l.b16 %v331
        %v515 = vunpack.c.h.b16 %v331
        %v516 = vunpack.c.l.b16 %v332
        %v517 = vunpack.c.h.b16 %v332
        %v518 = vunpack.c.l.b16 %v333
        %v519 = vunpack.c.h.b16 %v333
        %v520 = vunpack.c.l.b16 %v334
        %v521 = vunpack.c.h.b16 %v334
        %v522 = vunpack.c.l.b16 %v335
        %v523 = vunpack.c.h.b16 %v335
        %v524 = vunpack.c.l.b16 %v336
        %v525 = vunpack.c.h.b16 %v336
        %v526 = vunpack.c.l.b16 %v337
        %v527 = vunpack.c.h.b16 %v337
        %v528 = vunpack.c.l.b16 %v338
        %v529 = vunpack.c.h.b16 %v338
        %v530 = vunpack.c.l.b16 %v339
        %v531 = vunpack.c.h.b16 %v339
        %v532 = vunpack.c.l.b16 %v340
        %v533 = vunpack.c.h.b16 %v340
        %v534 = vunpack.c.l.b16 %v341
        %v535 = vunpack.c.h.b16 %v341
        %v536 = vunpack.c.l.b16 %v342
        %v537 = vunpack.c.h.b16 %v342
        %v538 = vunpack.c.l.b16 %v343
        %v539 = vunpack.c.h.b16 %v343
        %v540 = vunpack.c.l.b16 %v344
        %v541 = vunpack.c.h.b16 %v344
        %v542 = vunpack.c.l.b16 %v345
        %v543 = vunpack.c.h.b16 %v345
        %v544 = vunpack.c.l.b16 %v346
        %v545 = vunpack.c.h.b16 %v346
        %v546 = vunpack.c.l.b16 %v347
        %v547 = vunpack.c.h.b16 %v347
        %v548 = vunpack.c.l.b16 %v348
        %v549 = vunpack.c.h.b16 %v348
        %v550 = vunpack.c.l.b16 %v349
        %v551 = vunpack.c.h.b16 %v349
        %v552 = vpack.c.b16 %v428, %v424
        %v553 = vpack.c.b16 %v429, %v425
        %v554 = vpack.c.b16 %v430, %v426
        %v555 = vpack.c.b16 %v431, %v427
        %v556 = vpack.c.b16 %v436, %v432
        %v557 = vpack.c.b16 %v437, %v433
        %v558 = vpack.c.b16 %v438, %v434
        %v559 = vpack.c.b16 %v439, %v435
        %v560 = vpack.c.b16 %v444, %v440
        %v561 = vpack.c.b16 %v445, %v441
        %v562 = vpack.c.b16 %v446, %v442
        %v563 = vpack.c.b16 %v447, %v443
        %v564 = vpack.c.b16 %v452, %v448
        %v565 = vpack.c.b16 %v453, %v449
        %v566 = vpack.c.b16 %v454, %v450
        %v567 = vpack.c.b16 %v455, %v451
        %v568 = vpack.c.b16 %v460, %v456
        %v569 = vpack.c.b16 %v461, %v457
        %v570 = vpack.c.b16 %v462, %v458
        %v571 = vpack.c.b16 %v463, %v459
        %v572 = vpack.c.b16 %v468, %v464
        %v573 = vpack.c.b16 %v469, %v465
        %v574 = vpack.c.b16 %v470, %v466
        %v575 = vpack.c.b16 %v471, %v467
        %v576 = vpack.c.b16 %v476, %v472
        %v577 = vpack.c.b16 %v477, %v473
        %v578 = vpack.c.b16 %v478, %v474
        %v579 = vpack.c.b16 %v479, %v475
        %v580 = vpack.c.b16 %v484, %v480
        %v581 = vpack.c.b16 %v485, %v481
        %v582 = vpack.c.b16 %v486, %v482
        %v583 = vpack.c.b16 %v487, %v483
        %v584 = vpack.c.b16 %v492, %v488
        %v585 = vpack.c.b16 %v493, %v489
        %v586 = vpack.c.b16 %v494, %v490
        %v587 = vpack.c.b16 %v495, %v491
        %v588 = vpack.c.b16 %v500, %v496
        %v589 = vpack.c.b16 %v501, %v497
        %v590 = vpack.c.b16 %v502, %v498
        %v591 = vpack.c.b16 %v503, %v499
        %v592 = vpack.c.b16 %v508, %v504
        %v593 = vpack.c.b16 %v509, %v505
        %v594 = vpack.c.b16 %v510, %v506
        %v595 = vpack.c.b16 %v511, %v507
        %v596 = vpack.c.b16 %v516, %v512
        %v597 = vpack.c.b16 %v517, %v513
        %v598 = vpack.c.b16 %v518, %v514
        %v599 = vpack.c.b16 %v519, %v515
        %v600 = vpack.c.b16 %v524, %v520
        %v601 = vpack.c.b16 %v525, %v521
        %v602 = vpack.c.b16 %v526, %v522
        %v603 = vpack.c.b16 %v527, %v523
        %v604 = vpack.c.b16 %v532, %v528
        %v605 = vpack.c.b16 %v533, %v529
        %v606 = vpack.c.b16 %v534, %v530
        %v607 = vpack.c.b16 %v535, %v531
        %v608 = vpack.c.b16 %v540, %v536
        %v609 = vpack.c.b16 %v541, %v537
        %v610 = vpack.c.b16 %v542, %v538
        %v611 = vpack.c.b16 %v543, %v539
        %v612 = vpack.c.b16 %v548, %v544
        %v613 = vpack.c.b16 %v549, %v545
        %v614 = vpack.c.b16 %v550, %v546
        %v615 = vpack.c.b16 %v551, %v547
        %680 = vmatprep.subr.bf16.mxu0 %v553
        %681 = vmatpush1.bf16.msra.mxu0 %v552
        %682 = vmatprep.subr.bf16.mxu0 %v557
        %683 = vmatpush1.bf16.msra.mxu0 %v556
        %684 = vmatprep.subr.bf16.mxu0 %v561
        %685 = vmatpush1.bf16.msra.mxu0 %v560
        %686 = vmatprep.subr.bf16.mxu0 %v565
        %687 = vmatpush1.bf16.msra.mxu0 %v564
        %688 = vmatprep.subr.bf16.mxu0 %v569
        %689 = vmatpush1.bf16.msra.mxu0 %v568
        %690 = vmatprep.subr.bf16.mxu0 %v573
        %691 = vmatpush1.bf16.msra.mxu0 %v572
        %692 = vmatprep.subr.bf16.mxu0 %v577
        %693 = vmatpush1.bf16.msra.mxu0 %v576
        %694 = vmatprep.subr.bf16.mxu0 %v581
        %695 = vmatpush1.bf16.msra.mxu0 %v580
        %696 = vmatprep.subr.bf16.mxu0 %v585
        %697 = vmatpush1.bf16.msra.mxu0 %v584
        %698 = vmatprep.subr.bf16.mxu0 %v589
        %699 = vmatpush1.bf16.msra.mxu0 %v588
        %700 = vmatprep.subr.bf16.mxu0 %v593
        %701 = vmatpush1.bf16.msra.mxu0 %v592
        %702 = vmatprep.subr.bf16.mxu0 %v597
        %703 = vmatpush1.bf16.msra.mxu0 %v596
        %704 = vmatprep.subr.bf16.mxu0 %v601
        %705 = vmatpush1.bf16.msra.mxu0 %v600
        %706 = vmatprep.subr.bf16.mxu0 %v605
        %707 = vmatpush1.bf16.msra.mxu0 %v604
        %708 = vmatprep.subr.bf16.mxu0 %v609
        %709 = vmatpush1.bf16.msra.mxu0 %v608
        %710 = vmatprep.subr.bf16.mxu0 %v613
        %711 = vmatpush1.bf16.msra.mxu0 %v612
        %712 = vmatprep.mubr.bf16.mxu0 %v357
        %713 = vmatmul.mubr.bf16.gmra.mrb[0].mxu0 %v356
        %v714 = vpop.f32.mrb[0].mxu0
        %v715 = vadd.f32 0.0, %v714
        %v716 = vpop.f32.mrb[0].mxu0
        %v717 = vadd.f32 0.0, %v716
        %v718 = vpop.f32.mrb[0].mxu0
        %v719 = vadd.f32 0.0, %v718
        %v720 = vpop.f32.mrb[0].mxu0
        %v721 = vadd.f32 0.0, %v720
        %722 = vdwg.mxu0
        %723 = vmatprep.subr.bf16.mxu0 %v555
        %724 = vmatpush1.bf16.msra.mxu0 %v554
        %725 = vmatprep.subr.bf16.mxu0 %v559
        %726 = vmatpush1.bf16.msra.mxu0 %v558
        %727 = vmatprep.subr.bf16.mxu0 %v563
        %728 = vmatpush1.bf16.msra.mxu0 %v562
        %729 = vmatprep.subr.bf16.mxu0 %v567
        %730 = vmatpush1.bf16.msra.mxu0 %v566
        %731 = vmatprep.subr.bf16.mxu0 %v571
        %732 = vmatpush1.bf16.msra.mxu0 %v570
        %733 = vmatprep.subr.bf16.mxu0 %v575
        %734 = vmatpush1.bf16.msra.mxu0 %v574
        %735 = vmatprep.subr.bf16.mxu0 %v579
        %736 = vmatpush1.bf16.msra.mxu0 %v578
        %737 = vmatprep.subr.bf16.mxu0 %v583
        %738 = vmatpush1.bf16.msra.mxu0 %v582
        %739 = vmatprep.subr.bf16.mxu0 %v587
        %740 = vmatpush1.bf16.msra.mxu0 %v586
        %741 = vmatprep.subr.bf16.mxu0 %v591
        %742 = vmatpush1.bf16.msra.mxu0 %v590
        %743 = vmatprep.subr.bf16.mxu0 %v595
        %744 = vmatpush1.bf16.msra.mxu0 %v594
        %745 = vmatprep.subr.bf16.mxu0 %v599
        %746 = vmatpush1.bf16.msra.mxu0 %v598
        %747 = vmatprep.subr.bf16.mxu0 %v603
        %748 = vmatpush1.bf16.msra.mxu0 %v602
        %749 = vmatprep.subr.bf16.mxu0 %v607
        %750 = vmatpush1.bf16.msra.mxu0 %v606
        %751 = vmatprep.subr.bf16.mxu0 %v611
        %752 = vmatpush1.bf16.msra.mxu0 %v610
        %753 = vmatprep.subr.bf16.mxu0 %v615
        %754 = vmatpush1.bf16.msra.mxu0 %v614
        %755 = vmatprep.mubr.bf16.mxu0 %v357
        %756 = vmatmul.mubr.bf16.gmra.mrb[0].mxu0 %v356
        %v757 = vpop.f32.mrb[0].mxu0
        %v758 = vadd.f32 0.0, %v757
        %v759 = vpop.f32.mrb[0].mxu0
        %v760 = vadd.f32 0.0, %v759
        %v761 = vpop.f32.mrb[0].mxu0
        %v762 = vadd.f32 0.0, %v761
        %v763 = vpop.f32.mrb[0].mxu0
        %v764 = vadd.f32 0.0, %v763
        %765 = vdwg.mxu0
        %v766 = vxor.u32 %v715, 2147483648
        %v767 = vxor.u32 %v717, 2147483648
        %v768 = vxor.u32 %v719, 2147483648
        %v769 = vxor.u32 %v721, 2147483648
        %v770 = vmul.f32 %v766, 1.442695
        %v771 = vpow.pop %v770
        %v772 = vmul.f32 %v767, 1.442695
        %v773 = vpow.pop %v772
        %v774 = vmul.f32 %v768, 1.442695
        %v775 = vpow.pop %v774
        %v776 = vmul.f32 %v769, 1.442695
        %v777 = vpow.pop %v776
        %v778 = vadd.f32 %v771, 1.0
        %v779 = vadd.f32 %v773, 1.0
        %v780 = vadd.f32 %v775, 1.0
        %v781 = vadd.f32 %v777, 1.0
        %v782 = vrcp.pop %v778
        %v783 = vmul.f32 1.0, %v782
        %v784 = vrcp.pop %v779
        %v785 = vmul.f32 1.0, %v784
        %v786 = vrcp.pop %v780
        %v787 = vmul.f32 1.0, %v786
        %v788 = vrcp.pop %v781
        %v789 = vmul.f32 1.0, %v788
        %v790 = vmul.f32 %v715, %v783
        %v791 = vmul.f32 %v717, %v785
        %v792 = vmul.f32 %v719, %v787
        %v793 = vmul.f32 %v721, %v789
        %v794 = vmul.f32 %v790, %v758
        %v795 = vmul.f32 %v791, %v760
        %v796 = vmul.f32 %v792, %v762
        %v797 = vmul.f32 %v793, %v764
        %v798 = vpack.c.bf16 %v796, %v794
        %v799 = vpack.c.bf16 %v797, %v795
        %v800 = vld [vmem:[%s247] sm:$0xff]
        %v801 = vld [vmem:[%s247 + $0x8] sm:$0xff]
        %v802 = vld [vmem:[%s247 + $0x10] sm:$0xff]
        %v803 = vld [vmem:[%s247 + $0x18] sm:$0xff]
        %v804 = vld [vmem:[%s247 + $0x20] sm:$0xff]
        %v805 = vld [vmem:[%s247 + $0x28] sm:$0xff]
        %v806 = vld [vmem:[%s247 + $0x30] sm:$0xff]
        %v807 = vld [vmem:[%s247 + $0x38] sm:$0xff]
        %v808 = vld [vmem:[%s247 + $0x40] sm:$0xff]
        %v809 = vld [vmem:[%s247 + $0x48] sm:$0xff]
        %v810 = vld [vmem:[%s247 + $0x50] sm:$0xff]
        %v811 = vld [vmem:[%s247 + $0x58] sm:$0xff]
        %v812 = vld [vmem:[%s247 + $0x60] sm:$0xff]
        %v813 = vld [vmem:[%s247 + $0x68] sm:$0xff]
        %v814 = vld [vmem:[%s247 + $0x70] sm:$0xff]
        %v815 = vld [vmem:[%s247 + $0x78] sm:$0xff]
        %v816 = vld [vmem:[%s247 + $0x80] sm:$0xff]
        %v817 = vld [vmem:[%s247 + $0x88] sm:$0xff]
        %v818 = vld [vmem:[%s247 + $0x90] sm:$0xff]
        %v819 = vld [vmem:[%s247 + $0x98] sm:$0xff]
        %v820 = vld [vmem:[%s247 + $0xa0] sm:$0xff]
        %v821 = vld [vmem:[%s247 + $0xa8] sm:$0xff]
        %v822 = vld [vmem:[%s247 + $0xb0] sm:$0xff]
        %v823 = vld [vmem:[%s247 + $0xb8] sm:$0xff]
        %v824 = vld [vmem:[%s247 + $0xc0] sm:$0xff]
        %v825 = vld [vmem:[%s247 + $0xc8] sm:$0xff]
        %v826 = vld [vmem:[%s247 + $0xd0] sm:$0xff]
        %v827 = vld [vmem:[%s247 + $0xd8] sm:$0xff]
        %v828 = vld [vmem:[%s247 + $0xe0] sm:$0xff]
        %v829 = vld [vmem:[%s247 + $0xe8] sm:$0xff]
        %v830 = vld [vmem:[%s247 + $0xf0] sm:$0xff]
        %v831 = vld [vmem:[%s247 + $0xf8] sm:$0xff]
        %v864 = vunpack.c.l.b16 %v800
        %v865 = vunpack.c.h.b16 %v800
        %v866 = vunpack.c.l.b16 %v801
        %v867 = vunpack.c.h.b16 %v801
        %v868 = vunpack.c.l.b16 %v802
        %v869 = vunpack.c.h.b16 %v802
        %v870 = vunpack.c.l.b16 %v803
        %v871 = vunpack.c.h.b16 %v803
        %v872 = vunpack.c.l.b16 %v804
        %v873 = vunpack.c.h.b16 %v804
        %v874 = vunpack.c.l.b16 %v805
        %v875 = vunpack.c.h.b16 %v805
        %v876 = vunpack.c.l.b16 %v806
        %v877 = vunpack.c.h.b16 %v806
        %v878 = vunpack.c.l.b16 %v807
        %v879 = vunpack.c.h.b16 %v807
        %v880 = vunpack.c.l.b16 %v808
        %v881 = vunpack.c.h.b16 %v808
        %v882 = vunpack.c.l.b16 %v809
        %v883 = vunpack.c.h.b16 %v809
        %v884 = vunpack.c.l.b16 %v810
        %v885 = vunpack.c.h.b16 %v810
        %v886 = vunpack.c.l.b16 %v811
        %v887 = vunpack.c.h.b16 %v811
        %v888 = vunpack.c.l.b16 %v812
        %v889 = vunpack.c.h.b16 %v812
        %v890 = vunpack.c.l.b16 %v813
        %v891 = vunpack.c.h.b16 %v813
        %v892 = vunpack.c.l.b16 %v814
        %v893 = vunpack.c.h.b16 %v814
        %v894 = vunpack.c.l.b16 %v815
        %v895 = vunpack.c.h.b16 %v815
        %v896 = vunpack.c.l.b16 %v816
        %v897 = vunpack.c.h.b16 %v816
        %v898 = vunpack.c.l.b16 %v817
        %v899 = vunpack.c.h.b16 %v817
        %v900 = vunpack.c.l.b16 %v818
        %v901 = vunpack.c.h.b16 %v818
        %v902 = vunpack.c.l.b16 %v819
        %v903 = vunpack.c.h.b16 %v819
        %v904 = vunpack.c.l.b16 %v820
        %v905 = vunpack.c.h.b16 %v820
        %v906 = vunpack.c.l.b16 %v821
        %v907 = vunpack.c.h.b16 %v821
        %v908 = vunpack.c.l.b16 %v822
        %v909 = vunpack.c.h.b16 %v822
        %v910 = vunpack.c.l.b16 %v823
        %v911 = vunpack.c.h.b16 %v823
        %v912 = vunpack.c.l.b16 %v824
        %v913 = vunpack.c.h.b16 %v824
        %v914 = vunpack.c.l.b16 %v825
        %v915 = vunpack.c.h.b16 %v825
        %v916 = vunpack.c.l.b16 %v826
        %v917 = vunpack.c.h.b16 %v826
        %v918 = vunpack.c.l.b16 %v827
        %v919 = vunpack.c.h.b16 %v827
        %v920 = vunpack.c.l.b16 %v828
        %v921 = vunpack.c.h.b16 %v828
        %v922 = vunpack.c.l.b16 %v829
        %v923 = vunpack.c.h.b16 %v829
        %v924 = vunpack.c.l.b16 %v830
        %v925 = vunpack.c.h.b16 %v830
        %v926 = vunpack.c.l.b16 %v831
        %v927 = vunpack.c.h.b16 %v831
        %v928 = vpack.c.b16 %v866, %v864
        %v929 = vpack.c.b16 %v867, %v865
        %v930 = vpack.c.b16 %v870, %v868
        %v931 = vpack.c.b16 %v871, %v869
        %v932 = vpack.c.b16 %v874, %v872
        %v933 = vpack.c.b16 %v875, %v873
        %v934 = vpack.c.b16 %v878, %v876
        %v935 = vpack.c.b16 %v879, %v877
        %v936 = vpack.c.b16 %v882, %v880
        %v937 = vpack.c.b16 %v883, %v881
        %v938 = vpack.c.b16 %v886, %v884
        %v939 = vpack.c.b16 %v887, %v885
        %v940 = vpack.c.b16 %v890, %v888
        %v941 = vpack.c.b16 %v891, %v889
        %v942 = vpack.c.b16 %v894, %v892
        %v943 = vpack.c.b16 %v895, %v893
        %v944 = vpack.c.b16 %v898, %v896
        %v945 = vpack.c.b16 %v899, %v897
        %v946 = vpack.c.b16 %v902, %v900
        %v947 = vpack.c.b16 %v903, %v901
        %v948 = vpack.c.b16 %v906, %v904
        %v949 = vpack.c.b16 %v907, %v905
        %v950 = vpack.c.b16 %v910, %v908
        %v951 = vpack.c.b16 %v911, %v909
        %v952 = vpack.c.b16 %v914, %v912
        %v953 = vpack.c.b16 %v915, %v913
        %v954 = vpack.c.b16 %v918, %v916
        %v955 = vpack.c.b16 %v919, %v917
        %v956 = vpack.c.b16 %v922, %v920
        %v957 = vpack.c.b16 %v923, %v921
        %v958 = vpack.c.b16 %v926, %v924
        %v959 = vpack.c.b16 %v927, %v925
        %992 = vmatprep.subr.bf16.mxu0 %v929
        %993 = vmatpush1.bf16.msra.mxu0 %v928
        %994 = vmatprep.subr.bf16.mxu0 %v931
        %995 = vmatpush1.bf16.msra.mxu0 %v930
        %996 = vmatprep.subr.bf16.mxu0 %v933
        %997 = vmatpush1.bf16.msra.mxu0 %v932
        %998 = vmatprep.subr.bf16.mxu0 %v935
        %999 = vmatpush1.bf16.msra.mxu0 %v934
        %1000 = vmatprep.subr.bf16.mxu0 %v937
        %1001 = vmatpush1.bf16.msra.mxu0 %v936
        %1002 = vmatprep.subr.bf16.mxu0 %v939
        %1003 = vmatpush1.bf16.msra.mxu0 %v938
        %1004 = vmatprep.subr.bf16.mxu0 %v941
        %1005 = vmatpush1.bf16.msra.mxu0 %v940
        %1006 = vmatprep.subr.bf16.mxu0 %v943
        %1007 = vmatpush1.bf16.msra.mxu0 %v942
        %1008 = vmatprep.subr.bf16.mxu0 %v945
        %1009 = vmatpush1.bf16.msra.mxu0 %v944
        %1010 = vmatprep.subr.bf16.mxu0 %v947
        %1011 = vmatpush1.bf16.msra.mxu0 %v946
        %1012 = vmatprep.subr.bf16.mxu0 %v949
        %1013 = vmatpush1.bf16.msra.mxu0 %v948
        %1014 = vmatprep.subr.bf16.mxu0 %v951
        %1015 = vmatpush1.bf16.msra.mxu0 %v950
        %1016 = vmatprep.subr.bf16.mxu0 %v953
        %1017 = vmatpush1.bf16.msra.mxu0 %v952
        %1018 = vmatprep.subr.bf16.mxu0 %v955
        %1019 = vmatpush1.bf16.msra.mxu0 %v954
        %1020 = vmatprep.subr.bf16.mxu0 %v957
        %1021 = vmatpush1.bf16.msra.mxu0 %v956
        %1022 = vmatprep.subr.bf16.mxu0 %v959
        %1023 = vmatpush1.bf16.msra.mxu0 %v958
        %1024 = vmatprep.mubr.bf16.mxu0 %v799
        %1025 = vmatmul.mubr.bf16.gmra.mrb[0].mxu0 %v798
        %v1026 = vpop.f32.mrb[0].mxu0
        %v1027 = vadd.f32 0.0, %v1026
        %v1028 = vpop.f32.mrb[0].mxu0
        %v1029 = vadd.f32 0.0, %v1028
        %v1030 = vpop.f32.mrb[0].mxu0
        %v1031 = vadd.f32 0.0, %v1030
        %v1032 = vpop.f32.mrb[0].mxu0
        %v1033 = vadd.f32 0.0, %v1032
        %1034 = vdwg.mxu0
        %p1035 = scmp.eq.s32.totalorder %s28, 0
        // Predicated region
        $region45: #{tpu_custom_call.1} parent=31 // pred_check
          %p1036 = pneg %p1035
        $region46: #{tpu_custom_call.1} parent=31 // pred_check_branch
          %1038 = sbr.rel (%p1036) target = $region48
        $region47: #{tpu_custom_call.1} parent=31 // pred_region
          %1039 = vst [vmem:[#allocation2] sm:$0xff] %v1027
          %1040 = vst [vmem:[#allocation2 + $0x8] sm:$0xff] %v1029
          %1041 = vst [vmem:[#allocation2 + $0x10] sm:$0xff] %v1031
          %1042 = vst [vmem:[#allocation2 + $0x18] sm:$0xff] %v1033
        $region48: #{tpu_custom_call.1} parent=31 // pred_fallthru
          _
        %p1043 = scmp.ne.s32.totalorder %s28, 0
        // Predicated region
        $region49: #{tpu_custom_call.1} parent=31 // pred_check
          %p1044 = pneg %p1043
        $region50: #{tpu_custom_call.1} parent=31 // pred_check_branch
          %1046 = sbr.rel (%p1044) target = $region52
        $region51: #{tpu_custom_call.1} parent=31 // pred_region
          %v1047 = vld [vmem:[#allocation2] sm:$0xff]
          %v1048 = vld [vmem:[#allocation2 + $0x8] sm:$0xff]
          %v1049 = vld [vmem:[#allocation2 + $0x10] sm:$0xff]
          %v1050 = vld [vmem:[#allocation2 + $0x18] sm:$0xff]
          %v1051 = vadd.f32 %v1047, %v1027
          %v1052 = vadd.f32 %v1048, %v1029
          %v1053 = vadd.f32 %v1049, %v1031
          %v1054 = vadd.f32 %v1050, %v1033
          %1055 = vst [vmem:[#allocation2] sm:$0xff] %v1051
          %1056 = vst [vmem:[#allocation2 + $0x8] sm:$0xff] %v1052
          %1057 = vst [vmem:[#allocation2 + $0x10] sm:$0xff] %v1053
          %1058 = vst [vmem:[#allocation2 + $0x18] sm:$0xff] %v1054
        $region52: #{tpu_custom_call.1} parent=31 // pred_fallthru
          _
        %p1059 = scmp.eq.s32.totalorder %s28, 3
        // Predicated region
        $region53: #{tpu_custom_call.1} parent=31 // pred_check
          %p1060 = pneg %p1059
        $region54: #{tpu_custom_call.1} parent=31 // pred_check_branch
          %1062 = sbr.rel (%p1060) target = $region56
        $region55: #{tpu_custom_call.1} parent=31 // pred_region
          %v1063 = vld [vmem:[#allocation2] sm:$0xff]
          %v1064 = vld [vmem:[#allocation2 + $0x8] sm:$0xff]
          %v1065 = vld [vmem:[#allocation2 + $0x10] sm:$0xff]
          %v1066 = vld [vmem:[#allocation2 + $0x18] sm:$0xff]
          %1067 = vst [vmem:[%s279] sm:$0xff] %v1063
          %1068 = vst [vmem:[%s279 + $0x8] sm:$0xff] %v1064
          %1069 = vst [vmem:[%s279 + $0x10] sm:$0xff] %v1065
          %1070 = vst [vmem:[%s279 + $0x18] sm:$0xff] %v1066
        $region56: #{tpu_custom_call.1} parent=31 // pred_fallthru
          _
        %s1071 = sand.u32 %s121, 1
        %s1072 = scalar_lea.sflag [#allocation5], %s1071
        %s1073 = sand.u32 %s121, 1
        %s1074 = smul.addr %s1073, 32
        %s1075 = scalar_lea.vmem [#allocation9], %s1074
        // Predicated region
        $region57: #{tpu_custom_call.1} parent=31 // pred_check
          %p1076 = pneg %p131
        $region58: #{tpu_custom_call.1} parent=31 // pred_check_branch
          %1078 = sbr.rel (%p1076) target = $region60
        $region59: #{tpu_custom_call.1} parent=31 // pred_region
          %s1079 = smul.u32 2, %s27
          %s1081 = ssub.s32 512, 512
          %1082 = vsyncadd %s1072, %s1081
          %s1083 = smul.addr %s1079, 2
          %s1084 = smul.addr %s1083, 128
          %s1085 = scalar_lea.hbm %s3, %s1084
          %s1086 = sshll.u32 %s1075, 4
          %s1087 = int_to_ptr.vmem [resolvable:$true] %s1086
          %1092 = dma.vmem_to_hbm [thread:$0]  %s1087, 512, %s1085, %s1072, 256, 256, 16
        $region60: #{tpu_custom_call.1} parent=31 // pred_fallthru
          _
      $region32: #{tpu_custom_call.1} parent=5 // pred_fallthru
        _
      %p1093 = scmp.le.s32.totalorder 2, %s18
      // Predicated region
      $region61: #{tpu_custom_call.1} parent=5 // pred_check
        %p1094 = pneg %p1093
      $region62: #{tpu_custom_call.1} parent=5 // pred_check_branch
        %1096 = sbr.rel (%p1094) target = $region64
      $region63: #{tpu_custom_call.1} parent=5 // pred_region
        %s1097 = ssub.s32 %s18, 2
        // Predicated region
        $region65: #{tpu_custom_call.1} parent=63 // pred_check
          %p1098 = pneg %p137
        $region66: #{tpu_custom_call.1} parent=63 // pred_check_branch
          %1100 = sbr.rel (%p1098) target = $region68
        $region67: #{tpu_custom_call.1} parent=63 // pred_region
          %s1101 = sand.u32 %s122, 1
          %s1102 = scalar_lea.sflag [#allocation5], %s1101
          %s1103 = sand.u32 %s122, 1
          %s1104 = smul.addr %s1103, 32
          %s1105 = scalar_lea.vmem [#allocation9], %s1104
          %1106 = dma.done %s1102, 512
        $region68: #{tpu_custom_call.1} parent=63 // pred_fallthru
          _
      $region64: #{tpu_custom_call.1} parent=5 // pred_fallthru
        _
    $region6: #{tpu_custom_call.1} parent=1 // loop_footer
      %s22 = sadd.s32 1, %s18
    $region7: #{tpu_custom_call.1} parent=1 // loop_footer_branch
      %17 = sbr.rel target = $region3
    $region8: #{tpu_custom_call.1} parent=1 // loop_exit
      _
    %1107 = vsyncpa [#allocation4], 1
    %s1108 = scalar_lea.sflag [#allocation4], 1
    %1109 = vsyncpa %s1108, 1
    %1110 = vsyncpa [#allocation7], 1
    %s1111 = scalar_lea.sflag [#allocation7], 1
    %1112 = vsyncpa %s1111, 1
    %1113 = vsyncpa [#allocation5], 1
    %s1114 = scalar_lea.sflag [#allocation5], 1
    %1115 = vsyncpa %s1114, 1

</llo_original>
